<compile_context>
chip_gen: v6e
topology: v6e:2x2x1
jax: 0.10.0
libtpu: 0.0.40
codegen_flags: <defaults>
</compile_context>

<pallas_src>
import functools
import math

import jax
import jax.numpy as jnp
from jax.experimental import pallas as pl
from jax.experimental.pallas import tpu as pltpu


# ---------------------------------------------------------------------------
# Buffer construction (mirrors the PyTorch __init__)
# ---------------------------------------------------------------------------
def make_positional_encoding(d_model: int, max_len: int = 5000) -> jnp.ndarray:
    assert d_model % 2 == 0, "PositionalEncoding requires an even d_model"
    position = jnp.arange(0, max_len, dtype=jnp.float32)[:, None]            # (max_len, 1)
    div_term = jnp.exp(
        jnp.arange(0, d_model, 2, dtype=jnp.float32) * (-math.log(10000.0) / d_model)
    )                                                                         # (d_model/2,)
    ang = position * div_term                                                 # (max_len, d_model/2)
    # interleave sin (even lanes) and cos (odd lanes)
    pe = jnp.stack([jnp.sin(ang), jnp.cos(ang)], axis=-1).reshape(max_len, d_model)
    return pe[:, None, :]                                                     # (max_len, 1, d_model)


# ---------------------------------------------------------------------------
# Kernels
# ---------------------------------------------------------------------------
def _add_pe_3d_kernel(x_ref, pe_ref, o_ref):
    # x: (TS, B, D), pe: (TS, 1, D) -> broadcasts over the batch (sublane) axis.
    o_ref[...] = (x_ref[...] + pe_ref[...]).astype(o_ref.dtype)


def _add_pe_2d_sliced_kernel(x_ref, pe_ref, o_ref, *, batch: int, d_model: int):
    # Lane-dense path, D % 128 == 0.  x: (TS, B*D), pe: (TS, D).
    # Static per-batch slice loop: lane-aligned whole-vreg views, no (TS, B*D)
    # materialized temporary, unmasked lane-dense stores.
    pe = pe_ref[...]
    for b in range(batch):
        sl = slice(b * d_model, (b + 1) * d_model)
        o_ref[:, sl] = (x_ref[:, sl] + pe).astype(o_ref.dtype)


def _add_pe_2d_tiled_kernel(x_ref, pe_ref, o_ref, *, batch: int):
    # Lane-dense path, D < 128 but B*D % 128 == 0: tile pe across lanes.
    pe_tiled = jnp.tile(pe_ref[...], (1, batch))                              # (TS, B*D)
    o_ref[...] = (x_ref[...] + pe_tiled).astype(o_ref.dtype)


# ---------------------------------------------------------------------------
# Tile sizing (padding-aware) and wrapper
# ---------------------------------------------------------------------------
_MIN_GRID_STEPS = 4                       # >= 4 tiles: double-buffering + both v7x TCs
_TARGET_WORKING_SET = 28 * 1024 * 1024    # pipelined working-set target
_VMEM_LIMIT_BYTES = 48 * 1024 * 1024      # <= v7x 64 MiB per-TC; safe on v5e/v6e


def _pad_to(n: int, m: int) -> int:
    return ((n + m - 1) // m) * m


def _sublane_pack(itemsize: int) -> int:
    # f32 -> 8, bf16 -> 16, int8/fp8 -> 32 sublanes per packed vreg row.
    return max(8, 32 // itemsize)


def positional_encoding_forward(x: jnp.ndarray, pe: jnp.ndarray,
                                *, donate_x: bool = False) -> jnp.ndarray:
    """x: (seq_len, batch, d_model); pe: (max_len, 1, d_model)."""
    S, B, D = x.shape
    max_len = pe.shape[0]
    assert pe.shape == (max_len, 1, D)
    assert S <= max_len

    x_item = jnp.dtype(x.dtype).itemsize
    # Pre-cast pe once in the wrapper: halves pe HBM traffic + VMEM for bf16 x
    # and avoids per-element f32 promotion in the kernel.
    # TODO(synk): PyTorch promotes bf16 x + f32 pe to f32; we keep x.dtype.
    pe = pe.astype(x.dtype)

    compiler_params = pltpu.CompilerParams(
        dimension_semantics=("parallel",),          # independent seq tiles
        vmem_limit_bytes=_VMEM_LIMIT_BYTES,
    )
    io_alias = {0: 0} if donate_x else {}

    lane_dense_3d = (D % 128 == 0) and (B % 8 == 0)
    use_2d = ((B * D) % 128 == 0) and not lane_dense_3d
    sub = _sublane_pack(x_item)

    if use_2d:
        # ------------------- flattened lane-dense path -------------------
        # x/out rows are unpadded (B*D is a 128-multiple, ts a sublane multiple).
        x_row = B * D * x_item
        pe_row = _pad_to(D, 128) * x_item
        use_tile_temp = (D % 128 != 0)
        temp_row = B * D * x_item if use_tile_temp else 0
        # double-buffered x + out + pe tiles, plus the jnp.tile temporary.
        per_row = 2 * (2 * x_row + pe_row) + temp_row
        ts_vmem = max(sub, (max(1, _TARGET_WORKING_SET // per_row) // sub) * sub)

        if S <= sub:
            ts = S                                   # full-extent sublane block
        else:
            ts_cap = max(sub, (pl.cdiv(S, _MIN_GRID_STEPS) // sub) * sub)
            ts = min(ts_vmem, ts_cap)

        if use_tile_temp:
            kern = functools.partial(_add_pe_2d_tiled_kernel, batch=B)
        else:
            kern = functools.partial(_add_pe_2d_sliced_kernel, batch=B, d_model=D)

        x2 = x.reshape(S, B * D)                     # contiguous reshape: free
        pe2 = pe[:, 0, :]                            # (max_len, D); BlockSpec windows rows
        out2 = pl.pallas_call(
            kern,
            out_shape=jax.ShapeDtypeStruct((S, B * D), x.dtype),
            grid_spec=pltpu.PrefetchScalarGridSpec(
                num_scalar_prefetch=0,
                grid=(pl.cdiv(S, ts),),
                in_specs=[
                    pl.BlockSpec((ts, B * D), lambda i: (i, 0)),
                    pl.BlockSpec((ts, D), lambda i: (i, 0)),
                ],
                out_specs=pl.BlockSpec((ts, B * D), lambda i: (i, 0)),
            ),
            compiler_params=compiler_params,
            input_output_aliases=io_alias,
        )(x2, pe2)
        return out2.reshape(S, B, D)

    # ----------------------- general 3-D path -----------------------------
    # Dense fast path when B % 8 == 0 and D % 128 == 0.  Otherwise a known
    # perf cliff (masked partial stores + (pack/B)*(128/D)x VMEM/vreg
    # inflation) -- production d_model should be a 128-multiple.  Tile sizing
    # below uses the PADDED per-row bytes so it never exceeds the VMEM limit.
    x_row = _pad_to(B, sub) * _pad_to(D, 128) * x_item
    pe_row = sub * _pad_to(D, 128) * x_item          # (ts, 1, D) pads sublane dim to pack
    per_row = 2 * (2 * x_row + pe_row)               # double-buffered x + out + pe
    ts_vmem = max(1, _TARGET_WORKING_SET // per_row)
    ts_cap = max(1, pl.cdiv(S, _MIN_GRID_STEPS))
    ts = max(1, min(ts_vmem, ts_cap, S))

    return pl.pallas_call(
        _add_pe_3d_kernel,
        out_shape=jax.ShapeDtypeStruct((S, B, D), x.dtype),
        grid_spec=pltpu.PrefetchScalarGridSpec(
            num_scalar_prefetch=0,
            grid=(pl.cdiv(S, ts),),
            in_specs=[
                pl.BlockSpec((ts, B, D), lambda i: (i, 0, 0)),
                pl.BlockSpec((ts, 1, D), lambda i: (i, 0, 0)),  # windows pe[:S] for free
            ],
            out_specs=pl.BlockSpec((ts, B, D), lambda i: (i, 0, 0)),
        ),
        compiler_params=compiler_params,
        input_output_aliases=io_alias,
    )(x, pe)


if __name__ == "__main__":
    key = jax.random.PRNGKey(0)

    def check(seq_len, batch, d_model, max_len, dtype=jnp.float32, atol=1e-6):
        k = jax.random.fold_in(key, seq_len * 1000 + batch * 100 + d_model)
        x = jax.random.normal(k, (seq_len, batch, d_model), dtype=jnp.float32).astype(dtype)
        pe = make_positional_encoding(d_model, max_len)
        out = jax.block_until_ready(positional_encoding_forward(x, pe))
        ref = x + pe[:seq_len].astype(dtype)
        assert out.shape == (seq_len, batch, d_model), (out.shape, dtype)
        assert out.dtype == dtype
        assert jnp.allclose(out.astype(jnp.float32), ref.astype(jnp.float32),
                            atol=atol, rtol=1e-6), (seq_len, batch, d_model, dtype)

    # Small shapes consistent with the module's forward: (seq, batch, d_model)
    check(8, 2, 32, 64)                              # general 3-D fallback (D % 128 != 0)
    check(64, 2, 128, 128)                           # 2-D sliced lane-dense path (D % 128 == 0, B < 8)
    check(32, 2, 64, 64)                             # 2-D jnp.tile path (B*D % 128 == 0, D < 128)
    check(16, 8, 128, 64)                            # dense 3-D path (B % 8 == 0, D % 128 == 0)
    check(64, 2, 128, 128, dtype=jnp.bfloat16, atol=1e-1)   # bf16, pe pre-cast path

    print("KERNEL_OK")
</pallas_src>

<mosaic_0001>
module attributes {stable_mosaic.version = 11 : i64} {
  func.func @_add_pe_3d_kernel(%arg0: i32, %arg1: memref<2x2x32xf32, #tpu.memory_space<vmem>>, %arg2: memref<2x1x32xf32, #tpu.memory_space<vmem>>, %arg3: memref<2x2x32xf32, #tpu.memory_space<vmem>>) attributes {dimension_semantics = [#tpu.dimension_semantics<parallel>], iteration_bounds = array<i64: 4>, scalar_prefetch = 0 : i64, scratch_operands = 0 : i64, tpu.core_type = #tpu.core_type<tc>, window_params = [{transform_indices = @transform_0, window_bounds = array<i64: 2, 2, 32>}, {transform_indices = @transform_1, window_bounds = array<i64: 2, 1, 32>}, {transform_indices = @transform_2, window_bounds = array<i64: 2, 2, 32>}]} {
    %c0 = arith.constant 0 : index
    %c0_0 = arith.constant 0 : index
    %c0_1 = arith.constant 0 : index
    %0 = vector.load %arg1[%c0, %c0_0, %c0_1] : memref<2x2x32xf32, #tpu.memory_space<vmem>>, vector<2x2x32xf32>
    %c0_2 = arith.constant 0 : index
    %c0_3 = arith.constant 0 : index
    %c0_4 = arith.constant 0 : index
    %1 = vector.load %arg2[%c0_2, %c0_3, %c0_4] : memref<2x1x32xf32, #tpu.memory_space<vmem>>, vector<2x1x32xf32>
    %2 = vector.broadcast %1 : vector<2x1x32xf32> to vector<2x2x32xf32>
    %3 = arith.addf %0, %2 : vector<2x2x32xf32>
    %c0_5 = arith.constant 0 : index
    %c0_6 = arith.constant 0 : index
    %c0_7 = arith.constant 0 : index
    %4 = vector.load %arg3[%c0_5, %c0_6, %c0_7] : memref<2x2x32xf32, #tpu.memory_space<vmem>>, vector<2x2x32xf32>
    tpu.vector_store %arg3[%c0_5, %c0_6, %c0_7], %3 {strides = array<i32>} : memref<2x2x32xf32, #tpu.memory_space<vmem>>, vector<2x2x32xf32>,
    return
  }
  func.func @transform_0(%arg0: i32) -> (i32, i32, i32) {
    %c0_i32 = arith.constant 0 : i32
    %c0_i32_0 = arith.constant 0 : i32
    %c0_i32_1 = arith.constant 0 : i32
    return %arg0, %c0_i32, %c0_i32_0 : i32, i32, i32
  }
  func.func @transform_1(%arg0: i32) -> (i32, i32, i32) {
    %c0_i32 = arith.constant 0 : i32
    %c0_i32_0 = arith.constant 0 : i32
    %c0_i32_1 = arith.constant 0 : i32
    return %arg0, %c0_i32, %c0_i32_0 : i32, i32, i32
  }
  func.func @transform_2(%arg0: i32) -> (i32, i32, i32) {
    %c0_i32 = arith.constant 0 : i32
    %c0_i32_0 = arith.constant 0 : i32
    %c0_i32_1 = arith.constant 0 : i32
    return %arg0, %c0_i32, %c0_i32_0 : i32, i32, i32
  }
}

</mosaic_0001>

<llo_original>
// kernel: tpu_custom_call.1
$region0: #{tpu_custom_call.1}
  #allocation0 [shape = 'u32[]', space=smem, size = 0x4, offset = 0x4, fixed_abs, tag = 'smem constant byte address 0x4 - core index']
  #allocation1 [shape = 'u32[144,128]{1,0:T(1,128)}', space=vmem, size = 0x12000, scoped, tag = 'internal scratch']
  %s0 = inlined_call_operand.vmem [shape: f32[8,2,32], index: 0, kind: input, shape index: {}]
  %s1 = inlined_call_operand.vmem [shape: f32[64,1,32], index: 1, kind: input, shape index: {}]
  %s2 = inlined_call_operand.hbm [shape: f32[8,2,32], index: 2, kind: output, shape index: {}]
  %s3 = sld [smem:[#allocation0]]
  $region41: #{tpu_custom_call.1} parent=0
    _
  %s5 = ssub.s32 1, %s3
  %s6 = scalar_select 0, %s5, %s3
  $region1: #{tpu_custom_call.1} parent=0
    #allocation2 [shape = 'u8[4096]{0}', space=vmem, size = 0x1000, scoped, tag = 'output window, operand 0']
    #allocation3 [shape = 's32[2]{0}', space=sflag, size = 0x8, scoped, tag = 'scoped memory for tpu_custom_call.1']
    %7 = vsyncpa [#allocation3], 0
    %s8 = scalar_lea.sflag [#allocation3], 1
    %9 = vsyncpa %s8, 0
    loop: start=0, step=1, limit=6
    $region2: #{tpu_custom_call.1} parent=1 // loop_pre_header
      _
    $region3: #{tpu_custom_call.1} parent=1 // loop_header
      %s11 = sphi 0, %s15
      %p12 = scmp.ge.s32.totalorder %s11, 6
      %s21 = sphi 0, %s23
      %s24 = sphi 0, %s21
      %s25 = sphi 0, %s24
      %s41 = sphi 0, %s25
      %s47 = sphi 0, %s49
      %s50 = sphi 0, %s47
      %s51 = sphi 0, %s50
      %s67 = sphi 0, %s51
      %s73 = sphi 0, %s75
      %s76 = sphi 0, %s73
      %s77 = sphi 0, %s76
      %s93 = sphi 0, %s77
    $region4: #{tpu_custom_call.1} parent=1 // loop_header_branch
      %14 = sbr.rel (%p12) target = $region8
    $region5: #{tpu_custom_call.1} parent=1 // loop_body
      %s16 = ssub.s32 %s11, 1
      %s17 = ssub.s32 %s11, 2
      %s18 = sadd.s32 %s11, 1
      %s19 = ssub.s32 %s11, %s18
      %p20 = scmp.eq.s32.totalorder %s19, 0
      %s22 = sadd.s32 %s21, 1
      %s23 = scalar_select %p20, %s21, %s22
      %p26 = pneg %p20
      %p27 = scmp.eq.s32.totalorder %s11, 3
      %p28 = por %p26, %p27
      %p29 = scmp.ne.s32.totalorder %s21, %s24
      %p30 = scmp.eq.s32.totalorder %s11, 0
      %p31 = por %p29, %p30
      %p32 = scmp.ne.s32.totalorder %s21, %s24
      %p33 = scmp.eq.s32.totalorder %s16, 3
      %p34 = por %p32, %p33
      %p35 = scmp.ne.s32.totalorder %s24, %s25
      %p36 = scmp.eq.s32.totalorder %s16, 0
      %p37 = por %p35, %p36
      %p38 = scmp.ne.s32.totalorder %s24, %s25
      %p39 = scmp.eq.s32.totalorder %s17, 3
      %p40 = por %p38, %p39
      %p42 = scmp.ne.s32.totalorder %s25, %s41
      %p43 = scmp.eq.s32.totalorder %s17, 0
      %p44 = por %p42, %p43
      %s45 = ssub.s32 %s11, %s18
      %p46 = scmp.eq.s32.totalorder %s45, 0
      %s48 = sadd.s32 %s47, 1
      %s49 = scalar_select %p46, %s47, %s48
      %p52 = pneg %p46
      %p53 = scmp.eq.s32.totalorder %s11, 3
      %p54 = por %p52, %p53
      %p55 = scmp.ne.s32.totalorder %s47, %s50
      %p56 = scmp.eq.s32.totalorder %s11, 0
      %p57 = por %p55, %p56
      %p58 = scmp.ne.s32.totalorder %s47, %s50
      %p59 = scmp.eq.s32.totalorder %s16, 3
      %p60 = por %p58, %p59
      %p61 = scmp.ne.s32.totalorder %s50, %s51
      %p62 = scmp.eq.s32.totalorder %s16, 0
      %p63 = por %p61, %p62
      %p64 = scmp.ne.s32.totalorder %s50, %s51
      %p65 = scmp.eq.s32.totalorder %s17, 3
      %p66 = por %p64, %p65
      %p68 = scmp.ne.s32.totalorder %s51, %s67
      %p69 = scmp.eq.s32.totalorder %s17, 0
      %p70 = por %p68, %p69
      %s71 = ssub.s32 %s11, %s18
      %p72 = scmp.eq.s32.totalorder %s71, 0
      %s74 = sadd.s32 %s73, 1
      %s75 = scalar_select %p72, %s73, %s74
      %p78 = pneg %p72
      %p79 = scmp.eq.s32.totalorder %s11, 3
      %p80 = por %p78, %p79
      %p81 = scmp.ne.s32.totalorder %s73, %s76
      %p82 = scmp.eq.s32.totalorder %s11, 0
      %p83 = por %p81, %p82
      %p84 = scmp.ne.s32.totalorder %s73, %s76
      %p85 = scmp.eq.s32.totalorder %s16, 3
      %p86 = por %p84, %p85
      %p87 = scmp.ne.s32.totalorder %s76, %s77
      %p88 = scmp.eq.s32.totalorder %s16, 0
      %p89 = por %p87, %p88
      %p90 = scmp.ne.s32.totalorder %s76, %s77
      %p91 = scmp.eq.s32.totalorder %s17, 3
      %p92 = por %p90, %p91
      %p94 = scmp.ne.s32.totalorder %s77, %s93
      %p95 = scmp.eq.s32.totalorder %s17, 0
      %p96 = por %p94, %p95
      %p97 = scmp.le.s32.totalorder 1, %s11
      %p98 = scmp.lt.s32.totalorder %s11, 5
      %p99 = pnand %p97, %p98
      %p100 = pneg %p99
      // Predicated region
      $region9: #{tpu_custom_call.1} parent=5 // pred_check
        _
      $region10: #{tpu_custom_call.1} parent=5 // pred_check_branch
        %102 = sbr.rel (%p99) target = $region12
      $region11: #{tpu_custom_call.1} parent=5 // pred_region
        %s103 = ssub.s32 %s11, 1
      $region12: #{tpu_custom_call.1} parent=5 // pred_fallthru
        _
      %p104 = scmp.lt.s32.totalorder %s11, 4
      // Predicated region
      $region13: #{tpu_custom_call.1} parent=5 // pred_check
        %p105 = pneg %p104
      $region14: #{tpu_custom_call.1} parent=5 // pred_check_branch
        %107 = sbr.rel (%p105) target = $region16
      $region15: #{tpu_custom_call.1} parent=5 // pred_region
        // Predicated region
        $region17: #{tpu_custom_call.1} parent=15 // pred_check
          %p108 = pneg %p31
        $region18: #{tpu_custom_call.1} parent=15 // pred_check_branch
          %110 = sbr.rel (%p108) target = $region20
        $region19: #{tpu_custom_call.1} parent=15 // pred_region
          %s111 = smul.u32 2, %s11
          %p112 = scmp.lt.s32.totalorder %s111, 7
          %s113 = scalar_select %p112, %s111, 7
          %s114 = smul.addr %s113, 2
          %s115 = scalar_lea.vmem %s0, %s114
          %s116 = smul.u32 2, %s11
        $region20: #{tpu_custom_call.1} parent=15 // pred_fallthru
          _
        // Predicated region
        $region21: #{tpu_custom_call.1} parent=15 // pred_check
          %p117 = pneg %p57
        $region22: #{tpu_custom_call.1} parent=15 // pred_check_branch
          %119 = sbr.rel (%p117) target = $region24
        $region23: #{tpu_custom_call.1} parent=15 // pred_region
          %s120 = smul.u32 2, %s11
          %p121 = scmp.lt.s32.totalorder %s120, 63
          %s122 = scalar_select %p121, %s120, 63
          %s123 = scalar_lea.vmem %s1, %s122
          %s124 = smul.u32 2, %s11
        $region24: #{tpu_custom_call.1} parent=15 // pred_fallthru
          _
      $region16: #{tpu_custom_call.1} parent=5 // pred_fallthru
        _
      %p125 = scmp.le.s32.totalorder 1, %s11
      %p126 = scmp.lt.s32.totalorder %s11, 5
      %p127 = pnand %p125, %p126
      %p128 = pneg %p127
      // Predicated region
      $region25: #{tpu_custom_call.1} parent=5 // pred_check
        _
      $region26: #{tpu_custom_call.1} parent=5 // pred_check_branch
        %130 = sbr.rel (%p127) target = $region28
      $region27: #{tpu_custom_call.1} parent=5 // pred_region
        %s131 = ssub.s32 %s11, 1
        %s132 = smul.u32 2, %s16
        %p133 = scmp.lt.s32.totalorder %s132, 7
        %s134 = scalar_select %p133, %s132, 7
        %s135 = smul.addr %s134, 2
        %s136 = scalar_lea.vmem %s0, %s135
        %p137 = pneg %p37
        %p138 = pneg %p34
        %s139 = smul.u32 2, %s16
        %p140 = scmp.lt.s32.totalorder %s139, 63
        %s141 = scalar_select %p140, %s139, 63
        %s142 = scalar_lea.vmem %s1, %s141
        %p143 = pneg %p63
        %p144 = pneg %p60
        %p145 = pneg %p89
        %p146 = pneg %p86
        %s147 = sand.u32 %s76, 1
        %s148 = scalar_lea.sflag [#allocation3], %s147
        %s149 = sand.u32 %s76, 1
        %s150 = smul.addr %s149, 4
        %s151 = scalar_lea.vmem [#allocation2], %s150
        %s152 = smul.u32 2, %s16
        %p153 = scmp.lt.s32.totalorder %s152, 7
        %s154 = scalar_select %p153, %s152, 7
        %s155 = smul.addr %s154, 2
        %s156 = scalar_lea.vmem %s0, %s155
        %s157 = smul.u32 2, %s16
        %s158 = smul.u32 2, %s16
        %p159 = scmp.lt.s32.totalorder %s158, 63
        %s160 = scalar_select %p159, %s158, 63
        %s161 = scalar_lea.vmem %s1, %s160
        %s162 = smul.u32 2, %s16
        %s163 = smul.u32 2, %s16
        %v164 = vld [vmem:[%s156] sm:$0x3]
        %v165 = vld [vmem:[%s156 + $0x2] sm:$0x3]
        %v166 = vld [vmem:[%s161] sm:$0x1]
        %v167 = vld [vmem:[%s161 + $0x1] sm:$0x1]
        %v170 = vlaneseq
        %v171 = vshrl.u32 %v170, 7
        %v172 = vsub.s32 0, %v171
        %v173 = vrot.slane %v166, %v172
        %v174 = vlaneseq
        %v175 = vshrl.u32 %v174, 7
        %v176 = vsub.s32 0, %v175
        %v177 = vrot.slane %v167, %v176
        %v180 = vadd.f32 %v164, %v173
        %v181 = vadd.f32 %v165, %v177
        %vm182 = vcmask 254976
        %183 = vst.msk [vmem:[%s151] sm:$0x3] %vm182, %v180
        %184 = vst.msk [vmem:[%s151 + $0x2] sm:$0x3] %vm182, %v181
        %s185 = sand.u32 %s76, 1
        %s186 = scalar_lea.sflag [#allocation3], %s185
        %s187 = sand.u32 %s76, 1
        %s188 = smul.addr %s187, 4
        %s189 = scalar_lea.vmem [#allocation2], %s188
        // Predicated region
        $region29: #{tpu_custom_call.1} parent=27 // pred_check
          %p190 = pneg %p86
        $region30: #{tpu_custom_call.1} parent=27 // pred_check_branch
          %192 = sbr.rel (%p190) target = $region32
        $region31: #{tpu_custom_call.1} parent=27 // pred_region
          %s193 = smul.u32 2, %s16
          %s195 = ssub.s32 64, 64
          %196 = vsyncadd %s186, %s195
          %s197 = smul.addr %s193, 32
          %s198 = scalar_lea.hbm %s2, %s197
          %s199 = sshll.u32 %s189, 4
          %s200 = int_to_ptr.vmem [resolvable:$true] %s199
          %205 = dma.vmem_to_hbm [thread:$0]  %s200, 64, %s198, %s186, 32, 32, 2
        $region32: #{tpu_custom_call.1} parent=27 // pred_fallthru
          _
      $region28: #{tpu_custom_call.1} parent=5 // pred_fallthru
        _
      %p206 = scmp.le.s32.totalorder 2, %s11
      // Predicated region
      $region33: #{tpu_custom_call.1} parent=5 // pred_check
        %p207 = pneg %p206
      $region34: #{tpu_custom_call.1} parent=5 // pred_check_branch
        %209 = sbr.rel (%p207) target = $region36
      $region35: #{tpu_custom_call.1} parent=5 // pred_region
        %s210 = ssub.s32 %s11, 2
        // Predicated region
        $region37: #{tpu_custom_call.1} parent=35 // pred_check
          %p211 = pneg %p92
        $region38: #{tpu_custom_call.1} parent=35 // pred_check_branch
          %213 = sbr.rel (%p211) target = $region40
        $region39: #{tpu_custom_call.1} parent=35 // pred_region
          %s214 = sand.u32 %s77, 1
          %s215 = scalar_lea.sflag [#allocation3], %s214
          %s216 = sand.u32 %s77, 1
          %s217 = smul.addr %s216, 4
          %s218 = scalar_lea.vmem [#allocation2], %s217
          %219 = dma.done %s215, 64
        $region40: #{tpu_custom_call.1} parent=35 // pred_fallthru
          _
      $region36: #{tpu_custom_call.1} parent=5 // pred_fallthru
        _
    $region6: #{tpu_custom_call.1} parent=1 // loop_footer
      %s15 = sadd.s32 1, %s11
    $region7: #{tpu_custom_call.1} parent=1 // loop_footer_branch
      %10 = sbr.rel target = $region3
    $region8: #{tpu_custom_call.1} parent=1 // loop_exit
      _
    %220 = vsyncpa [#allocation3], 1
    %s221 = scalar_lea.sflag [#allocation3], 1
    %222 = vsyncpa %s221, 1

</llo_original>
